<compile_context>
chip_gen: v5e
topology: v5e:2x2
jax: 0.10.0
libtpu: 0.0.40
codegen_flags: <defaults>
</compile_context>

<pallas_src>
import math

import jax
import jax.numpy as jnp
from jax.experimental import pallas as pl
from jax.experimental.pallas import tpu as pltpu


# ----------------------------- generation-aware sizing -----------------------------

def _vmem_capacity_bytes():
    try:
        return int(pltpu.get_tpu_info().vmem_capacity_bytes)
    except Exception:
        return 128 * 1024 * 1024


_VMEM_CAP = _vmem_capacity_bytes()
_BIG_VMEM = _VMEM_CAP >= 96 * 1024 * 1024          # v5e/v6e: 128 MiB; v7x: 64 MiB
_VMEM_LIMIT = int(_VMEM_CAP * 3 // 4)              # 96 MiB on v5e/v6e, 48 MiB on v7x
_PDIST_TILE = 1024 if _BIG_VMEM else 512           # mem-bound: biggest tile that fits
_PROJ_TILE = 512 if _BIG_VMEM else 256
_ATTN_TILE = 256 if _BIG_VMEM else 128             # v7x: (tn*K,dm) f32 temps bound VMEM


def _row_tile(n, max_tile):
    """Largest power-of-two row tile <= max_tile (>=32) dividing n; else the full n.

    Multiples of 32 keep both f32 (8-row) and bf16 (16-row) sublane tiling happy;
    a full-extent block is always legal.
    """
    t = max_tile
    while t >= 32:
        if n % t == 0:
            return t
        t //= 2
    return n


# ----------------------------- Pallas kernels -----------------------------

def _pdist_kernel(xr_ref, xt_ref, out_ref):
    # xr_ref: (1, tn, 3) row block; xt_ref: (1, 3, N) transposed full cloud (per batch)
    # out_ref: (1, tn, N) squared euclidean distances (bf16), exact (a-b)^2 form:
    # three VPU broadcast FMAs (a 3-deep MXU contraction is <2.5% utilization and the
    # matmul form suffers cancellation).
    xr = xr_ref[0]                                              # (tn, 3) f32
    xt = xt_ref[0]                                              # (3, N)  f32
    d0 = xr[:, 0:1] - xt[0:1, :]                                # (tn, N)
    d1 = xr[:, 1:2] - xt[1:2, :]
    d2 = xr[:, 2:3] - xt[2:3, :]
    out_ref[0] = (d0 * d0 + d1 * d1 + d2 * d2).astype(out_ref.dtype)


def _proj_kernel(feat_ref, fc1w_ref, fc1b_ref, wqkv_ref, qkv_ref):
    # feat_ref: (1, tn, d_points) f32 -> qkv_ref: (1, tn, 3*d_model) bf16.
    # fc1 then a single fused QKV matmul (wq|wk|wv), bf16 operands / f32 accumulation.
    # One wide lane-dense store (no three sub-128-lane strip stores).
    f = feat_ref[0].astype(jnp.bfloat16)                        # (tn, dp)
    x = jnp.dot(f, fc1w_ref[...],
                preferred_element_type=jnp.float32) + fc1b_ref[...]
    qkv = jnp.dot(x.astype(jnp.bfloat16), wqkv_ref[...],
                  preferred_element_type=jnp.float32)           # (tn, 3*dm)
    qkv_ref[0] = qkv.astype(qkv_ref.dtype)


def _attn_kernel(xyz_ref, lxyz_ref, qkv_ref, kvg_ref, pre_ref,
                 dw1_ref, db1_ref, dw2_ref, db2_ref,
                 gw1_ref, gb1_ref, gw2_ref, gb2_ref,
                 fc2w_ref, fc2b_ref,
                 out_ref, attn_ref):
    _, tn, K, dm2 = kvg_ref.shape
    dm = dm2 // 2

    xyz = xyz_ref[0]                                            # (tn, 3)      f32
    lxyz = lxyz_ref[0]                                          # (tn, K, 3)   f32
    q = qkv_ref[0][:, :dm].astype(jnp.float32)                  # (tn, dm)
    kvg = kvg_ref[0]                                            # (tn, K, 2dm) bf16
    kg = kvg[:, :, :dm].astype(jnp.float32)                     # (tn, K, dm)
    vg = kvg[:, :, dm:].astype(jnp.float32)                     # (tn, K, dm)

    # fc_delta(xyz[:, :, None] - local_xyz): Linear(3, dm) -> ReLU -> Linear(dm, dm)
    # First layer as three VPU broadcast FMAs on the (tn, K, dm) layout directly
    # (no (tn*K, 3) reshape; a 3-deep MXU contraction is ~1-2% utilization).
    rel = xyz[:, None, :] - lxyz                                # (tn, K, 3)
    dw1 = dw1_ref[...]                                          # (3, dm) f32
    h = (rel[:, :, 0:1] * dw1[0:1, :]
         + rel[:, :, 1:2] * dw1[1:2, :]
         + rel[:, :, 2:3] * dw1[2:3, :]) + db1_ref[...]         # (tn, K, dm)
    h = jnp.maximum(h, 0.0).reshape(tn * K, dm)                 # leading-dim merge (cheap)
    pos = jnp.dot(h.astype(jnp.bfloat16), dw2_ref[...],
                  preferred_element_type=jnp.float32) + db2_ref[...]   # (tn*K, dm)

    # fc_gamma(q[:, :, None] - k + pos_enc): Linear(dm, dm) -> ReLU -> Linear(dm, dm)
    pa = (q[:, None, :] - kg).reshape(tn * K, dm) + pos
    g = jnp.dot(pa.astype(jnp.bfloat16), gw1_ref[...],
                preferred_element_type=jnp.float32) + gb1_ref[...]
    g = jnp.maximum(g, 0.0)
    logits = jnp.dot(g.astype(jnp.bfloat16), gw2_ref[...],
                     preferred_element_type=jnp.float32) + gb2_ref[...]

    # softmax(logits / sqrt(dm)) over the neighbor axis (dim = -2)
    logits = logits.reshape(tn, K, dm) * (1.0 / math.sqrt(dm))
    m = jnp.max(logits, axis=1, keepdims=True)
    e = jnp.exp(logits - m)
    s = jnp.sum(e, axis=1, keepdims=True)
    r = pl.reciprocal(s, approx=True)                           # EUP divide
    r = r * (2.0 - s * r)                                       # one Newton step: rows sum ~1
    attn = e * r                                                # (tn, K, dm)

    # einsum('bmnf,bmnf->bmf', attn, v + pos_enc), then fc2 + residual.
    res = jnp.sum(attn * (vg + pos.reshape(tn, K, dm)), axis=1)         # (tn, dm)
    out = jnp.dot(res.astype(jnp.bfloat16), fc2w_ref[...],
                  preferred_element_type=jnp.float32) + fc2b_ref[...]
    out_ref[0] = out + pre_ref[0]

    # Lane-dense (tn, K*dm) store of the attention weights (row-major over (K, dm)):
    # static per-neighbor slices + lane concat instead of a minor-dim reshape.
    attn_ref[0] = jnp.concatenate([attn[:, j, :] for j in range(K)], axis=-1)


# ----------------------------- wrappers -----------------------------

def pairwise_sq_dists(xyz, max_tile=None):
    B, N, _ = xyz.shape
    tn = _row_tile(N, _PDIST_TILE if max_tile is None else max_tile)
    xyz_t = jnp.transpose(xyz, (0, 2, 1))                       # (B, 3, N), tiny
    return pl.pallas_call(
        _pdist_kernel,
        grid=(B, N // tn),
        in_specs=[
            pl.BlockSpec((1, tn, 3), lambda b, i: (b, i, 0)),
            pl.BlockSpec((1, 3, N), lambda b, i: (b, 0, 0)),
        ],
        out_specs=pl.BlockSpec((1, tn, N), lambda b, i: (b, i, 0)),
        out_shape=jax.ShapeDtypeStruct((B, N, N), jnp.bfloat16),  # ordering only -> bf16
        compiler_params=pltpu.CompilerParams(
            dimension_semantics=("parallel", "parallel"),
            vmem_limit_bytes=_VMEM_LIMIT),
    )(xyz, xyz_t)


def projections(feat, params, max_tile=None):
    B, N, dp = feat.shape
    dm = params["fc1_w"].shape[1]
    tn = _row_tile(N, _PROJ_TILE if max_tile is None else max_tile)
    # pre-cast weights once (no per-grid-step cast, half the weight DMA bytes)
    fc1w = params["fc1_w"].astype(jnp.bfloat16)
    wqkv = jnp.concatenate([params["wq"], params["wk"], params["wv"]],
                           axis=1).astype(jnp.bfloat16)          # (dm, 3*dm)
    return pl.pallas_call(
        _proj_kernel,
        grid=(B, N // tn),
        in_specs=[
            pl.BlockSpec((1, tn, dp), lambda b, i: (b, i, 0)),
            pl.BlockSpec((dp, dm), lambda b, i: (0, 0)),
            pl.BlockSpec((1, dm), lambda b, i: (0, 0)),
            pl.BlockSpec((dm, 3 * dm), lambda b, i: (0, 0)),
        ],
        out_specs=pl.BlockSpec((1, tn, 3 * dm), lambda b, i: (b, i, 0)),
        out_shape=jax.ShapeDtypeStruct((B, N, 3 * dm), jnp.bfloat16),
        compiler_params=pltpu.CompilerParams(
            dimension_semantics=("parallel", "parallel"),
            vmem_limit_bytes=_VMEM_LIMIT),
    )(feat, fc1w, params["fc1_b"], wqkv)


def attention(xyz, local_xyz, qkv, kvg, pre, params, max_tile=None):
    B, N, K, dm2 = kvg.shape
    dm = dm2 // 2
    dp = pre.shape[-1]
    tn = _row_tile(N, _ATTN_TILE if max_tile is None else max_tile)
    bf = lambda w: w.astype(jnp.bfloat16)

    in_specs = [
        pl.BlockSpec((1, tn, 3), lambda b, i: (b, i, 0)),
        pl.BlockSpec((1, tn, K, 3), lambda b, i: (b, i, 0, 0)),
        pl.BlockSpec((1, tn, 3 * dm), lambda b, i: (b, i, 0)),
        pl.BlockSpec((1, tn, K, 2 * dm), lambda b, i: (b, i, 0, 0)),
        pl.BlockSpec((1, tn, dp), lambda b, i: (b, i, 0)),
        pl.BlockSpec((3, dm), lambda b, i: (0, 0)),
        pl.BlockSpec((1, dm), lambda b, i: (0, 0)),
        pl.BlockSpec((dm, dm), lambda b, i: (0, 0)),
        pl.BlockSpec((1, dm), lambda b, i: (0, 0)),
        pl.BlockSpec((dm, dm), lambda b, i: (0, 0)),
        pl.BlockSpec((1, dm), lambda b, i: (0, 0)),
        pl.BlockSpec((dm, dm), lambda b, i: (0, 0)),
        pl.BlockSpec((1, dm), lambda b, i: (0, 0)),
        pl.BlockSpec((dm, dp), lambda b, i: (0, 0)),
        pl.BlockSpec((1, dp), lambda b, i: (0, 0)),
    ]
    out_specs = [
        pl.BlockSpec((1, tn, dp), lambda b, i: (b, i, 0)),
        pl.BlockSpec((1, tn, K * dm), lambda b, i: (b, i, 0)),   # lane-dense attn store
    ]
    out_shape = [
        jax.ShapeDtypeStruct((B, N, dp), jnp.float32),
        jax.ShapeDtypeStruct((B, N, K * dm), jnp.float32),
    ]
    return pl.pallas_call(
        _attn_kernel,
        grid=(B, N // tn),
        in_specs=in_specs,
        out_specs=out_specs,
        out_shape=out_shape,
        compiler_params=pltpu.CompilerParams(
            dimension_semantics=("parallel", "parallel"),
            vmem_limit_bytes=_VMEM_LIMIT),
    )(xyz, local_xyz, qkv, kvg, pre,
      params["dw1"], params["db1"], bf(params["dw2"]), params["db2"],
      bf(params["gw1"]), params["gb1"], bf(params["gw2"]), params["gb2"],
      bf(params["fc2_w"]), params["fc2_b"])


def pt_transformer_block(xyz, features, params, K):
    """Forward of ptTransformerBlock (IFPS=False / knn_points path). Returns (res, attn)."""
    B, N, _ = features.shape
    dm = params["fc1_w"].shape[1]

    # KNN: distances in Pallas (bf16), top-k selection + gathers in plain JAX
    # (data-dependent indexing).
    d = pairwise_sq_dists(xyz)                          # (B, N, N) bf16
    _, idx = jax.lax.top_k(-d, K)                       # (B, N, K), ascending distance
    gather = jax.vmap(lambda pts, ii: pts[ii])          # pts: (N, C), ii: (N, K) -> (N, K, C)
    local_xyz = gather(xyz, idx)                        # (B, N, K, 3) f32 (small)

    qkv = projections(features, params)                 # (B, N, 3*dm) bf16 (q | k | v)
    kvg = gather(qkv[..., dm:], idx)                    # (B, N, K, 2*dm) bf16, single gather

    res, attn_flat = attention(xyz, local_xyz, qkv, kvg, features, params)
    return res, attn_flat.reshape(B, N, K, dm)


# ----------------------------- params & reference -----------------------------

def init_params(key, d_points, d_model):
    keys = jax.random.split(key, 15)

    def lin(kw, kb, fan_in, fan_out, bias=True):
        bound = 1.0 / math.sqrt(fan_in)
        w = jax.random.uniform(kw, (fan_in, fan_out), jnp.float32, -bound, bound)
        b = (jax.random.uniform(kb, (1, fan_out), jnp.float32, -bound, bound)
             if bias else None)
        return w, b

    p = {}
    p["fc1_w"], p["fc1_b"] = lin(keys[0], keys[1], d_points, d_model)
    p["fc2_w"], p["fc2_b"] = lin(keys[2], keys[3], d_model, d_points)
    p["dw1"], p["db1"] = lin(keys[4], keys[5], 3, d_model)
    p["dw2"], p["db2"] = lin(keys[6], keys[7], d_model, d_model)
    p["gw1"], p["gb1"] = lin(keys[8], keys[9], d_model, d_model)
    p["gw2"], p["gb2"] = lin(keys[10], keys[11], d_model, d_model)
    p["wq"], _ = lin(keys[12], keys[12], d_model, d_model, bias=False)
    p["wk"], _ = lin(keys[13], keys[13], d_model, d_model, bias=False)
    p["wv"], _ = lin(keys[14], keys[14], d_model, d_model, bias=False)
    return p


def reference_forward(xyz, features, params, idx):
    """Pure-JAX f32 reference given precomputed neighbor indices."""
    dm = params["fc1_w"].shape[1]
    P = jax.lax.Precision.HIGHEST

    def lin(x, w, b=None):
        y = jnp.einsum("...i,ij->...j", x, w, precision=P)
        return y if b is None else y + b[0]

    gather = jax.vmap(lambda pts, ii: pts[ii])
    x = lin(features, params["fc1_w"], params["fc1_b"])
    q = lin(x, params["wq"])
    kg = gather(lin(x, params["wk"]), idx)
    vg = gather(lin(x, params["wv"]), idx)
    local_xyz = gather(xyz, idx)

    rel = xyz[:, :, None, :] - local_xyz
    pos = lin(jax.nn.relu(lin(rel, params["dw1"], params["db1"])),
              params["dw2"], params["db2"])
    pa = q[:, :, None, :] - kg + pos
    attn = lin(jax.nn.relu(lin(pa, params["gw1"], params["gb1"])),
               params["gw2"], params["gb2"])
    attn = jax.nn.softmax(attn / math.sqrt(dm), axis=-2)
    res = jnp.einsum("bmnf,bmnf->bmf", attn, vg + pos)
    res = lin(res, params["fc2_w"], params["fc2_b"]) + features
    return res, attn


# ----------------------------- main -----------------------------

if __name__ == "__main__":
    B, N, d_points, d_model, K = 2, 16, 8, 32, 4

    key = jax.random.PRNGKey(0)
    k_xyz, k_feat, k_par = jax.random.split(key, 3)
    xyz = jax.random.normal(k_xyz, (B, N, 3), jnp.float32)
    features = jax.random.normal(k_feat, (B, N, d_points), jnp.float32)
    params = init_params(k_par, d_points, d_model)

    res, attn = pt_transformer_block(xyz, features, params, K)
    jax.block_until_ready((res, attn))

    # sanity check vs. pure-JAX f32 reference, sharing the kernel-computed neighbor indices
    # (recomputed identically here). Kernel stores q/k/v and gathered k|v in bf16 and uses
    # bf16 MXU operands (f32 accumulation), so tolerances are wider than a pure-f32 check.
    d = pairwise_sq_dists(xyz)
    _, idx = jax.lax.top_k(-d, K)
    res_ref, attn_ref = reference_forward(xyz, features, params, idx)
    assert res.shape == (B, N, d_points) and attn.shape == (B, N, K, d_model)
    assert jnp.allclose(res, res_ref, atol=3e-2, rtol=3e-2)
    assert jnp.allclose(attn, attn_ref, atol=3e-2, rtol=3e-2)

    print("KERNEL_OK")
</pallas_src>

<mosaic_0001>
module attributes {stable_mosaic.version = 11 : i64} {
  func.func @_pdist_kernel(%arg0: i32, %arg1: i32, %arg2: memref<1x16x3xf32, #tpu.memory_space<vmem>>, %arg3: memref<1x3x16xf32, #tpu.memory_space<vmem>>, %arg4: memref<1x16x16xbf16, #tpu.memory_space<vmem>>) attributes {dimension_semantics = [#tpu.dimension_semantics<parallel>, #tpu.dimension_semantics<parallel>], iteration_bounds = array<i64: 2, 1>, scalar_prefetch = 0 : i64, scratch_operands = 0 : i64, tpu.core_type = #tpu.core_type<tc>, window_params = [{transform_indices = @transform_0, window_bounds = array<i64: 1, 16, 3>}, {transform_indices = @transform_1, window_bounds = array<i64: 1, 3, 16>}, {transform_indices = @transform_2, window_bounds = array<i64: 1, 16, 16>}]} {
    %c0 = arith.constant 0 : index
    %c0_0 = arith.constant 0 : index
    %c0_1 = arith.constant 0 : index
    %0 = vector.load %arg2[%c0, %c0_0, %c0_1] : memref<1x16x3xf32, #tpu.memory_space<vmem>>, vector<1x16x3xf32>
    %1 = vector.shape_cast %0 : vector<1x16x3xf32> to vector<16x3xf32>
    %c0_2 = arith.constant 0 : index
    %c0_3 = arith.constant 0 : index
    %c0_4 = arith.constant 0 : index
    %2 = vector.load %arg3[%c0_2, %c0_3, %c0_4] : memref<1x3x16xf32, #tpu.memory_space<vmem>>, vector<1x3x16xf32>
    %3 = vector.shape_cast %2 : vector<1x3x16xf32> to vector<3x16xf32>
    %4 = vector.extract_strided_slice %1 {offsets = [0, 0], sizes = [16, 1], strides = [1, 1]} : vector<16x3xf32> to vector<16x1xf32>
    %5 = vector.extract_strided_slice %3 {offsets = [0, 0], sizes = [1, 16], strides = [1, 1]} : vector<3x16xf32> to vector<1x16xf32>
    %6 = vector.broadcast %4 : vector<16x1xf32> to vector<16x16xf32>
    %7 = vector.broadcast %5 : vector<1x16xf32> to vector<16x16xf32>
    %8 = arith.subf %6, %7 : vector<16x16xf32>
    %9 = vector.extract_strided_slice %1 {offsets = [0, 1], sizes = [16, 1], strides = [1, 1]} : vector<16x3xf32> to vector<16x1xf32>
    %10 = vector.extract_strided_slice %3 {offsets = [1, 0], sizes = [1, 16], strides = [1, 1]} : vector<3x16xf32> to vector<1x16xf32>
    %11 = vector.broadcast %9 : vector<16x1xf32> to vector<16x16xf32>
    %12 = vector.broadcast %10 : vector<1x16xf32> to vector<16x16xf32>
    %13 = arith.subf %11, %12 : vector<16x16xf32>
    %14 = vector.extract_strided_slice %1 {offsets = [0, 2], sizes = [16, 1], strides = [1, 1]} : vector<16x3xf32> to vector<16x1xf32>
    %15 = vector.extract_strided_slice %3 {offsets = [2, 0], sizes = [1, 16], strides = [1, 1]} : vector<3x16xf32> to vector<1x16xf32>
    %16 = vector.broadcast %14 : vector<16x1xf32> to vector<16x16xf32>
    %17 = vector.broadcast %15 : vector<1x16xf32> to vector<16x16xf32>
    %18 = arith.subf %16, %17 : vector<16x16xf32>
    %19 = arith.mulf %8, %8 : vector<16x16xf32>
    %20 = arith.mulf %13, %13 : vector<16x16xf32>
    %21 = arith.addf %19, %20 : vector<16x16xf32>
    %22 = arith.mulf %18, %18 : vector<16x16xf32>
    %23 = arith.addf %21, %22 : vector<16x16xf32>
    %24 = arith.truncf %23 : vector<16x16xf32> to vector<16x16xbf16>
    %c0_5 = arith.constant 0 : index
    %c0_6 = arith.constant 0 : index
    %c0_7 = arith.constant 0 : index
    %25 = vector.load %arg4[%c0_5, %c0_6, %c0_7] : memref<1x16x16xbf16, #tpu.memory_space<vmem>>, vector<1x16x16xbf16>
    %26 = vector.shape_cast %25 : vector<1x16x16xbf16> to vector<16x16xbf16>
    %27 = vector.shape_cast %24 : vector<16x16xbf16> to vector<1x16x16xbf16>
    tpu.vector_store %arg4[%c0_5, %c0_6, %c0_7], %27 {strides = array<i32>} : memref<1x16x16xbf16, #tpu.memory_space<vmem>>, vector<1x16x16xbf16>,
    return
  }
  func.func @transform_0(%arg0: i32, %arg1: i32) -> (i32, i32, i32) {
    %c0_i32 = arith.constant 0 : i32
    %c0_i32_0 = arith.constant 0 : i32
    return %arg0, %arg1, %c0_i32 : i32, i32, i32
  }
  func.func @transform_1(%arg0: i32, %arg1: i32) -> (i32, i32, i32) {
    %c0_i32 = arith.constant 0 : i32
    %c0_i32_0 = arith.constant 0 : i32
    %c0_i32_1 = arith.constant 0 : i32
    return %arg0, %c0_i32, %c0_i32_0 : i32, i32, i32
  }
  func.func @transform_2(%arg0: i32, %arg1: i32) -> (i32, i32, i32) {
    %c0_i32 = arith.constant 0 : i32
    %c0_i32_0 = arith.constant 0 : i32
    return %arg0, %arg1, %c0_i32 : i32, i32, i32
  }
}

</mosaic_0001>

<llo_original>
// kernel: tpu_custom_call.1
$region0: #{tpu_custom_call.1}
  #allocation0 [shape = 'u32[]', space=smem, size = 0x4, offset = 0x4, fixed_abs, tag = 'smem constant byte address 0x4 - core index']
  #allocation1 [shape = 'u32[72,128]{1,0:T(1,128)}', space=vmem, size = 0x9000, scoped, tag = 'internal scratch']
  %s0 = inlined_call_operand.vmem [shape: f32[2,16,3], index: 0, kind: input, shape index: {}]
  %s1 = inlined_call_operand.vmem [shape: f32[2,3,16], index: 1, kind: input, shape index: {}]
  %s2 = inlined_call_operand.hbm [shape: bf16[2,16,16], index: 2, kind: output, shape index: {}]
  %s3 = sld [smem:[#allocation0]]
  $region41: #{tpu_custom_call.1} parent=0
    _
  %s5 = ssub.s32 1, %s3
  %s6 = scalar_select 0, %s5, %s3
  $region1: #{tpu_custom_call.1} parent=0
    #allocation2 [shape = 'u8[8192]{0}', space=vmem, size = 0x2000, scoped, tag = 'output window, operand 0']
    #allocation3 [shape = 's32[2]{0}', space=sflag, size = 0x8, scoped, tag = 'scoped memory for tpu_custom_call.1']
    %7 = vsyncpa [#allocation3], 0
    %s8 = scalar_lea.sflag [#allocation3], 1
    %9 = vsyncpa %s8, 0
    loop: start=0, step=1, limit=4
    $region2: #{tpu_custom_call.1} parent=1 // loop_pre_header
      _
    $region3: #{tpu_custom_call.1} parent=1 // loop_header
      %s11 = sphi 0, %s15
      %p12 = scmp.ge.s32.totalorder %s11, 4
      %s18 = sphi 0, %s30
      %s19 = sphi 0, %s26
      %s20 = sphi 0, %s18
      %s21 = sphi 0, %s19
      %s22 = sphi 0, %s20
      %s23 = sphi 0, %s21
      %s35 = sphi 0, %s37
      %s38 = sphi 0, %s35
      %s39 = sphi 0, %s38
      %s55 = sphi 0, %s39
      %s61 = sphi 0, %s63
      %s64 = sphi 0, %s61
      %s65 = sphi 0, %s64
      %s81 = sphi 0, %s65
      %s89 = sphi 0, %s91
      %s92 = sphi 0, %s89
      %s93 = sphi 0, %s92
      %s109 = sphi 0, %s93
    $region4: #{tpu_custom_call.1} parent=1 // loop_header_branch
      %14 = sbr.rel (%p12) target = $region8
    $region5: #{tpu_custom_call.1} parent=1 // loop_body
      %s16 = ssub.s32 %s11, 1
      %s17 = ssub.s32 %s11, 2
      %s24 = sadd.s32 1, %s19
      %p25 = scmp.ge.s32.totalorder %s24, 1
      %s26 = scalar_select %p25, 0, %s24
      %s27 = sadd.s32 1, %s18
      %s28 = scalar_select %p25, %s27, %s18
      %p29 = scmp.ge.s32.totalorder %s28, 2
      %s30 = scalar_select %p29, 0, %s28
      %s31 = ssub.s32 %s18, %s30
      %s32 = ssub.s32 %s19, %s26
      %s33 = sor.u32 %s31, %s32
      %p34 = scmp.eq.s32.totalorder %s33, 0
      %s36 = sadd.s32 %s35, 1
      %s37 = scalar_select %p34, %s35, %s36
      %p40 = pneg %p34
      %p41 = scmp.eq.s32.totalorder %s11, 1
      %p42 = por %p40, %p41
      %p43 = scmp.ne.s32.totalorder %s35, %s38
      %p44 = scmp.eq.s32.totalorder %s11, 0
      %p45 = por %p43, %p44
      %p46 = scmp.ne.s32.totalorder %s35, %s38
      %p47 = scmp.eq.s32.totalorder %s16, 1
      %p48 = por %p46, %p47
      %p49 = scmp.ne.s32.totalorder %s38, %s39
      %p50 = scmp.eq.s32.totalorder %s16, 0
      %p51 = por %p49, %p50
      %p52 = scmp.ne.s32.totalorder %s38, %s39
      %p53 = scmp.eq.s32.totalorder %s17, 1
      %p54 = por %p52, %p53
      %p56 = scmp.ne.s32.totalorder %s39, %s55
      %p57 = scmp.eq.s32.totalorder %s17, 0
      %p58 = por %p56, %p57
      %s59 = ssub.s32 %s18, %s30
      %p60 = scmp.eq.s32.totalorder %s59, 0
      %s62 = sadd.s32 %s61, 1
      %s63 = scalar_select %p60, %s61, %s62
      %p66 = pneg %p60
      %p67 = scmp.eq.s32.totalorder %s11, 1
      %p68 = por %p66, %p67
      %p69 = scmp.ne.s32.totalorder %s61, %s64
      %p70 = scmp.eq.s32.totalorder %s11, 0
      %p71 = por %p69, %p70
      %p72 = scmp.ne.s32.totalorder %s61, %s64
      %p73 = scmp.eq.s32.totalorder %s16, 1
      %p74 = por %p72, %p73
      %p75 = scmp.ne.s32.totalorder %s64, %s65
      %p76 = scmp.eq.s32.totalorder %s16, 0
      %p77 = por %p75, %p76
      %p78 = scmp.ne.s32.totalorder %s64, %s65
      %p79 = scmp.eq.s32.totalorder %s17, 1
      %p80 = por %p78, %p79
      %p82 = scmp.ne.s32.totalorder %s65, %s81
      %p83 = scmp.eq.s32.totalorder %s17, 0
      %p84 = por %p82, %p83
      %s85 = ssub.s32 %s18, %s30
      %s86 = ssub.s32 %s19, %s26
      %s87 = sor.u32 %s85, %s86
      %p88 = scmp.eq.s32.totalorder %s87, 0
      %s90 = sadd.s32 %s89, 1
      %s91 = scalar_select %p88, %s89, %s90
      %p94 = pneg %p88
      %p95 = scmp.eq.s32.totalorder %s11, 1
      %p96 = por %p94, %p95
      %p97 = scmp.ne.s32.totalorder %s89, %s92
      %p98 = scmp.eq.s32.totalorder %s11, 0
      %p99 = por %p97, %p98
      %p100 = scmp.ne.s32.totalorder %s89, %s92
      %p101 = scmp.eq.s32.totalorder %s16, 1
      %p102 = por %p100, %p101
      %p103 = scmp.ne.s32.totalorder %s92, %s93
      %p104 = scmp.eq.s32.totalorder %s16, 0
      %p105 = por %p103, %p104
      %p106 = scmp.ne.s32.totalorder %s92, %s93
      %p107 = scmp.eq.s32.totalorder %s17, 1
      %p108 = por %p106, %p107
      %p110 = scmp.ne.s32.totalorder %s93, %s109
      %p111 = scmp.eq.s32.totalorder %s17, 0
      %p112 = por %p110, %p111
      %p113 = scmp.le.s32.totalorder 1, %s11
      %p114 = scmp.lt.s32.totalorder %s11, 3
      %p115 = pnand %p113, %p114
      %p116 = pneg %p115
      // Predicated region
      $region9: #{tpu_custom_call.1} parent=5 // pred_check
        _
      $region10: #{tpu_custom_call.1} parent=5 // pred_check_branch
        %118 = sbr.rel (%p115) target = $region12
      $region11: #{tpu_custom_call.1} parent=5 // pred_region
        %s119 = ssub.s32 %s11, 1
      $region12: #{tpu_custom_call.1} parent=5 // pred_fallthru
        _
      %p120 = scmp.lt.s32.totalorder %s11, 2
      // Predicated region
      $region13: #{tpu_custom_call.1} parent=5 // pred_check
        %p121 = pneg %p120
      $region14: #{tpu_custom_call.1} parent=5 // pred_check_branch
        %123 = sbr.rel (%p121) target = $region16
      $region15: #{tpu_custom_call.1} parent=5 // pred_region
        // Predicated region
        $region17: #{tpu_custom_call.1} parent=15 // pred_check
          %p124 = pneg %p45
        $region18: #{tpu_custom_call.1} parent=15 // pred_check_branch
          %126 = sbr.rel (%p124) target = $region20
        $region19: #{tpu_custom_call.1} parent=15 // pred_region
          %s127 = smul.u32 2, %s19
          %p128 = scmp.lt.s32.totalorder %s18, 1
          %s129 = scalar_select %p128, %s18, 1
          %p130 = scmp.lt.s32.totalorder %s127, 1
          %s131 = scalar_select %p130, %s127, 1
          %s132 = smul.addr %s129, 2
          %s133 = sadd.s32 %s131, %s132
          %s134 = smul.addr %s133, 8
          %s135 = scalar_lea.vmem %s0, %s134
          %s136 = smul.u32 2, %s19
        $region20: #{tpu_custom_call.1} parent=15 // pred_fallthru
          _
        // Predicated region
        $region21: #{tpu_custom_call.1} parent=15 // pred_check
          %p137 = pneg %p71
        $region22: #{tpu_custom_call.1} parent=15 // pred_check_branch
          %139 = sbr.rel (%p137) target = $region24
        $region23: #{tpu_custom_call.1} parent=15 // pred_region
          %p140 = scmp.lt.s32.totalorder %s18, 1
          %s141 = scalar_select %p140, %s18, 1
          %s142 = smul.addr %s141, 4
          %s143 = scalar_lea.vmem %s1, %s142
        $region24: #{tpu_custom_call.1} parent=15 // pred_fallthru
          _
      $region16: #{tpu_custom_call.1} parent=5 // pred_fallthru
        _
      %p144 = scmp.le.s32.totalorder 1, %s11
      %p145 = scmp.lt.s32.totalorder %s11, 3
      %p146 = pnand %p144, %p145
      %p147 = pneg %p146
      // Predicated region
      $region25: #{tpu_custom_call.1} parent=5 // pred_check
        _
      $region26: #{tpu_custom_call.1} parent=5 // pred_check_branch
        %149 = sbr.rel (%p146) target = $region28
      $region27: #{tpu_custom_call.1} parent=5 // pred_region
        %s150 = ssub.s32 %s11, 1
        %s151 = smul.u32 2, %s21
        %p152 = scmp.lt.s32.totalorder %s20, 1
        %s153 = scalar_select %p152, %s20, 1
        %p154 = scmp.lt.s32.totalorder %s151, 1
        %s155 = scalar_select %p154, %s151, 1
        %s156 = smul.addr %s153, 2
        %s157 = sadd.s32 %s155, %s156
        %s158 = smul.addr %s157, 8
        %s159 = scalar_lea.vmem %s0, %s158
        %p160 = pneg %p51
        %p161 = pneg %p48
        %p162 = scmp.lt.s32.totalorder %s20, 1
        %s163 = scalar_select %p162, %s20, 1
        %s164 = smul.addr %s163, 4
        %s165 = scalar_lea.vmem %s1, %s164
        %p166 = pneg %p77
        %p167 = pneg %p74
        %p168 = pneg %p105
        %p169 = pneg %p102
        %s170 = sand.u32 %s92, 1
        %s171 = scalar_lea.sflag [#allocation3], %s170
        %s172 = sand.u32 %s92, 1
        %s173 = smul.addr %s172, 8
        %s174 = scalar_lea.vmem [#allocation2], %s173
        %s175 = smul.u32 2, %s21
        %p176 = scmp.lt.s32.totalorder %s20, 1
        %s177 = scalar_select %p176, %s20, 1
        %p178 = scmp.lt.s32.totalorder %s175, 1
        %s179 = scalar_select %p178, %s175, 1
        %s180 = smul.addr %s177, 2
        %s181 = sadd.s32 %s179, %s180
        %s182 = smul.addr %s181, 8
        %s183 = scalar_lea.vmem %s0, %s182
        %s184 = smul.u32 2, %s21
        %p185 = scmp.lt.s32.totalorder %s20, 1
        %s186 = scalar_select %p185, %s20, 1
        %s187 = smul.addr %s186, 4
        %s188 = scalar_lea.vmem %s1, %s187
        %s189 = smul.u32 2, %s21
        %v190 = vld [vmem:[%s183] sm:$0xff]
        %v191 = vld [vmem:[%s183 + $0x8] sm:$0xff]
        %v192 = vld [vmem:[%s188] sm:$0x7]
        %194 = vset.pattern.permute.xlu0 0
        %195 = vperm.xlu0 %194, %v190
        %v196 = vpop.permute.xlu0 %195
        %199 = vset.pattern.permute.xlu0 0
        %200 = vperm.xlu0 %199, %v191
        %v201 = vpop.permute.xlu0 %200
        %v203 = vperm.slane %v192, 0
        %v204 = vsub.f32 %v196, %v203
        %v205 = vsub.f32 %v201, %v203
        %206 = vset.pattern.permute.xlu0 1
        %207 = vperm.xlu0 %206, %v190
        %v208 = vpop.permute.xlu0 %207
        %210 = vset.pattern.permute.xlu0 1
        %211 = vperm.xlu0 %210, %v191
        %v212 = vpop.permute.xlu0 %211
        %v214 = vperm.slane %v192, 1
        %v215 = vsub.f32 %v208, %v214
        %v216 = vsub.f32 %v212, %v214
        %217 = vset.pattern.permute.xlu0 2
        %218 = vperm.xlu0 %217, %v190
        %v219 = vpop.permute.xlu0 %218
        %221 = vset.pattern.permute.xlu0 2
        %222 = vperm.xlu0 %221, %v191
        %v223 = vpop.permute.xlu0 %222
        %v225 = vperm.slane %v192, 2
        %v226 = vsub.f32 %v219, %v225
        %v227 = vsub.f32 %v223, %v225
        %v228 = vmul.f32 %v204, %v204
        %v229 = vmul.f32 %v205, %v205
        %v230 = vmul.f32 %v215, %v215
        %v231 = vmul.f32 %v216, %v216
        %v232 = vadd.f32 %v228, %v230
        %v233 = vadd.f32 %v229, %v231
        %v234 = vmul.f32 %v226, %v226
        %v235 = vmul.f32 %v227, %v227
        %v236 = vadd.f32 %v232, %v234
        %v237 = vadd.f32 %v233, %v235
        %v238 = vpack.c.bf16 %v236, %v236
        %v239 = vpack.c.bf16 %v237, %v237
        %vm240 = vcmask 125952
        %241 = vst.msk [vmem:[%s174] sm:$0xf] %vm240, %v238
        %242 = vst.msk [vmem:[%s174 + $0x4] sm:$0xf] %vm240, %v239
        %s243 = sand.u32 %s92, 1
        %s244 = scalar_lea.sflag [#allocation3], %s243
        %s245 = sand.u32 %s92, 1
        %s246 = smul.addr %s245, 8
        %s247 = scalar_lea.vmem [#allocation2], %s246
        // Predicated region
        $region29: #{tpu_custom_call.1} parent=27 // pred_check
          %p248 = pneg %p102
        $region30: #{tpu_custom_call.1} parent=27 // pred_check_branch
          %250 = sbr.rel (%p248) target = $region32
        $region31: #{tpu_custom_call.1} parent=27 // pred_region
          %s251 = smul.u32 2, %s21
          %253 = vsyncadd %s244, 0
          %s254 = smul.addr %s20, 2
          %s255 = sadd.s32 %s251, %s254
          %s256 = smul.addr %s255, 4
          %s257 = scalar_lea.hbm %s2, %s256
          %s258 = sshll.u32 %s247, 4
          %s259 = int_to_ptr.vmem [resolvable:$true] %s258
          %s260 = sshll.u32 %s257, 4
          %s261 = int_to_ptr.hbm [resolvable:$true] %s260
          %266 = dma.vmem_to_hbm [thread:$0]  %s259, 128, %s261, %s244, 64, 64, 4
        $region32: #{tpu_custom_call.1} parent=27 // pred_fallthru
          _
      $region28: #{tpu_custom_call.1} parent=5 // pred_fallthru
        _
      %p267 = scmp.le.s32.totalorder 2, %s11
      // Predicated region
      $region33: #{tpu_custom_call.1} parent=5 // pred_check
        %p268 = pneg %p267
      $region34: #{tpu_custom_call.1} parent=5 // pred_check_branch
        %270 = sbr.rel (%p268) target = $region36
      $region35: #{tpu_custom_call.1} parent=5 // pred_region
        %s271 = ssub.s32 %s11, 2
        // Predicated region
        $region37: #{tpu_custom_call.1} parent=35 // pred_check
          %p272 = pneg %p108
        $region38: #{tpu_custom_call.1} parent=35 // pred_check_branch
          %274 = sbr.rel (%p272) target = $region40
        $region39: #{tpu_custom_call.1} parent=35 // pred_region
          %s275 = sand.u32 %s93, 1
          %s276 = scalar_lea.sflag [#allocation3], %s275
          %s277 = sand.u32 %s93, 1
          %s278 = smul.addr %s277, 8
          %s279 = scalar_lea.vmem [#allocation2], %s278
          %281 = dma.done %s276, 128
        $region40: #{tpu_custom_call.1} parent=35 // pred_fallthru
          _
      $region36: #{tpu_custom_call.1} parent=5 // pred_fallthru
        _
    $region6: #{tpu_custom_call.1} parent=1 // loop_footer
      %s15 = sadd.s32 1, %s11
    $region7: #{tpu_custom_call.1} parent=1 // loop_footer_branch
      %10 = sbr.rel target = $region3
    $region8: #{tpu_custom_call.1} parent=1 // loop_exit
      _
    %282 = vsyncpa [#allocation3], 1
    %s283 = scalar_lea.sflag [#allocation3], 1
    %284 = vsyncpa %s283, 1

</llo_original>
